<compile_context>
chip_gen: v7x
topology: tpu7x:2x2x1
jax: 0.10.0
libtpu: 0.0.40
codegen_flags: <defaults>
</compile_context>

<pallas_src>
import functools

import jax
import jax.numpy as jnp
from jax.experimental import pallas as pl
from jax.experimental.pallas import tpu as pltpu


def _round_up(n, m):
    return ((n + m - 1) // m) * m


# ---------------------------------------------------------------------------
# Kernel: 4 fused dense layers on the MXU over one (TB, F) batch tile.
# ZScore (de)normalization is pre-folded into w1/b1 and w4/b4.
# Matmul operands may be bf16 or f32; accumulation is always f32.
# ---------------------------------------------------------------------------
def autoencoder_kernel(x_ref,
                       w1_ref, b1_ref, w2_ref, b2_ref,
                       w3_ref, b3_ref, w4_ref, b4_ref,
                       out_ref):
    cdt = w1_ref.dtype  # matmul operand dtype (f32, or bf16 fast path)

    h = jnp.dot(x_ref[...], w1_ref[...],
                preferred_element_type=jnp.float32) + b1_ref[...]
    h = jnp.maximum(h, 0.0)

    h = jnp.dot(h.astype(cdt), w2_ref[...],
                preferred_element_type=jnp.float32) + b2_ref[...]
    h = jnp.maximum(h, 0.0)          # encoder_out (latent)

    h = jnp.dot(h.astype(cdt), w3_ref[...],
                preferred_element_type=jnp.float32) + b3_ref[...]
    h = jnp.maximum(h, 0.0)

    h = jnp.dot(h.astype(cdt), w4_ref[...],
                preferred_element_type=jnp.float32) + b4_ref[...]

    out_ref[...] = h.astype(out_ref.dtype)


# ---------------------------------------------------------------------------
# One-time constant transform: fold ZScore into the first/last Linear layer.
#   (x - mean)/std @ w1 + b1  ==  x @ (w1 / std^T) + (b1 - (mean/std) @ w1)
#   (h @ w4 + b4)*std + mean  ==  h @ (w4 * std)   + (b4*std + mean)
# Weights are cast to io_dtype (bf16 on v6e/v7x); biases stay f32 because
# they add into the f32 MXU accumulator.
# ---------------------------------------------------------------------------
def fold_zscore_into_params(params, io_dtype=jnp.float32):
    mean, std = params["mean"], params["std"]          # [1, F]
    inv_std = 1.0 / std
    w1 = params["w1"] * inv_std.T                      # scale rows of w1  [F,1]
    b1 = params["b1"] - (mean * inv_std) @ params["w1"]
    w4 = params["w4"] * std                            # scale cols of w4  [1,F]
    b4 = params["b4"] * std + mean
    f32 = jnp.float32
    return dict(
        w1=w1.astype(io_dtype),            b1=b1.astype(f32),
        w2=params["w2"].astype(io_dtype),  b2=params["b2"].astype(f32),
        w3=params["w3"].astype(io_dtype),  b3=params["b3"].astype(f32),
        w4=w4.astype(io_dtype),            b4=b4.astype(f32),
    )


@functools.partial(jax.jit, static_argnames=("tb",))
def autoencoder_forward(x, folded, *, tb=512):
    """x: [B, F].  folded: output of fold_zscore_into_params.

    Batch-tiled fused forward. Returns [B, F] in the folded weights' dtype.
    """
    io_dtype = folded["w1"].dtype
    B, F = x.shape
    x = x.astype(io_dtype)

    # Batch tile: sublane multiple (8 for f32, 16 for packed bf16), capped by B
    # so tiny batches don't force a padded single tile much larger than B.
    sub = 8 * (4 // jnp.dtype(io_dtype).itemsize)
    tb = max(sub, min(tb, _round_up(B, sub)))
    tb = _round_up(tb, sub)
    Bp = _round_up(B, tb)
    if Bp != B:
        x = jnp.pad(x, ((0, Bp - B), (0, 0)))

    H = folded["w1"].shape[1]
    L = folded["w2"].shape[1]

    ops = (x, folded["w1"], folded["b1"], folded["w2"], folded["b2"],
           folded["w3"], folded["b3"], folded["w4"], folded["b4"])

    def resident(a):
        # Whole array, constant block index -> DMA'd once, VMEM-resident
        # across every grid step.
        return pl.BlockSpec(a.shape, lambda i: (0,) * a.ndim)

    itemsize = jnp.dtype(io_dtype).itemsize
    flops = 2 * Bp * (F * H + H * L + L * H + H * F)
    bytes_accessed = 2 * Bp * F * itemsize + sum(
        int(a.size) * a.dtype.itemsize for a in ops[1:])

    # NOTE: at F=32/H=64/L=16 this kernel is HBM-bound on x/out; a lane-dense
    # (batch-packed-into-lanes) layout only pays off if the caller can supply
    # and consume that layout without an extra XLA copy, so keep row-major.
    out = pl.pallas_call(
        autoencoder_kernel,
        out_shape=jax.ShapeDtypeStruct((Bp, F), io_dtype),
        grid=(Bp // tb,),
        in_specs=[pl.BlockSpec((tb, F), lambda i: (i, 0))]
                 + [resident(a) for a in ops[1:]],
        out_specs=pl.BlockSpec((tb, F), lambda i: (i, 0)),
        compiler_params=pltpu.CompilerParams(
            # Batch axis is embarrassingly parallel -> both TensorCores on
            # v7x; no-op on single-TC v5e/v6e.
            dimension_semantics=("parallel",),
        ),
        cost_estimate=pl.CostEstimate(
            flops=flops, transcendentals=0, bytes_accessed=bytes_accessed),
    )(*ops)
    return out[:B]


# ---------------------------------------------------------------------------
# Deterministic synthetic parameters (Linear weights stored [in, out]) and a
# pure-JAX reference of the original module semantics.
# ---------------------------------------------------------------------------
def init_params(key, F, H, L):
    ks = jax.random.split(key, 10)

    def w(k, fan_in, fan_out):
        bound = 1.0 / jnp.sqrt(fan_in)
        return jax.random.uniform(k, (fan_in, fan_out), jnp.float32, -bound, bound)

    def b(k, fan_in, fan_out):
        bound = 1.0 / jnp.sqrt(fan_in)
        return jax.random.uniform(k, (1, fan_out), jnp.float32, -bound, bound)

    return dict(
        mean=jax.random.normal(ks[0], (1, F), jnp.float32),
        std=jax.random.uniform(ks[1], (1, F), jnp.float32, 0.5, 1.5),
        w1=w(ks[2], F, H), b1=b(ks[3], F, H),
        w2=w(ks[4], H, L), b2=b(ks[5], H, L),
        w3=w(ks[6], L, H), b3=b(ks[7], L, H),
        w4=w(ks[8], H, F), b4=b(ks[9], H, F),
    )


def reference_forward(x, p):
    h = (x - p["mean"]) / p["std"]
    h = jnp.maximum(h @ p["w1"] + p["b1"], 0.0)
    h = jnp.maximum(h @ p["w2"] + p["b2"], 0.0)
    h = jnp.maximum(h @ p["w3"] + p["b3"], 0.0)
    h = h @ p["w4"] + p["b4"]
    return h * p["std"] + p["mean"]


if __name__ == "__main__":
    B, F, H, L = 128, 32, 64, 16   # batch, input_features, hidden, latent
    key = jax.random.PRNGKey(0)
    kx, kp = jax.random.split(key)
    x = jax.random.normal(kx, (B, F), jnp.float32)
    params = init_params(kp, F, H, L)
    ref = reference_forward(x, params)

    # f32 path, grid of 2 batch tiles of 64 (folding only reorders flops).
    folded_f32 = fold_zscore_into_params(params, jnp.float32)
    out_f32 = jax.block_until_ready(autoencoder_forward(x, folded_f32, tb=64))
    assert out_f32.shape == (B, F)
    assert jnp.allclose(out_f32, ref, rtol=1e-3, atol=1e-3)

    # bf16 I/O path (v6e/v7x fast path: bf16 matmul operands, f32 accumulation).
    folded_bf16 = fold_zscore_into_params(params, jnp.bfloat16)
    out_bf16 = jax.block_until_ready(autoencoder_forward(x, folded_bf16, tb=64))
    assert out_bf16.shape == (B, F)
    assert jnp.allclose(out_bf16.astype(jnp.float32), ref, rtol=5e-2, atol=2.5e-1)

    print("KERNEL_OK")
</pallas_src>

<mosaic_0001>
module attributes {stable_mosaic.version = 11 : i64} {
  func.func @autoencoder_kernel(%arg0: i32, %arg1: memref<64x32xf32, #tpu.memory_space<vmem>>, %arg2: memref<32x64xf32, #tpu.memory_space<vmem>>, %arg3: memref<1x64xf32, #tpu.memory_space<vmem>>, %arg4: memref<64x16xf32, #tpu.memory_space<vmem>>, %arg5: memref<1x16xf32, #tpu.memory_space<vmem>>, %arg6: memref<16x64xf32, #tpu.memory_space<vmem>>, %arg7: memref<1x64xf32, #tpu.memory_space<vmem>>, %arg8: memref<64x32xf32, #tpu.memory_space<vmem>>, %arg9: memref<1x32xf32, #tpu.memory_space<vmem>>, %arg10: memref<64x32xf32, #tpu.memory_space<vmem>>) attributes {dimension_semantics = [#tpu.dimension_semantics<parallel>], iteration_bounds = array<i64: 2>, scalar_prefetch = 0 : i64, scratch_operands = 0 : i64, tpu.core_type = #tpu.core_type<tc>, window_params = [{transform_indices = @transform_0, window_bounds = array<i64: 64, 32>}, {pipeline_mode = #tpu.pipeline_mode<synchronous>, transform_indices = @transform_1, window_bounds = array<i64: 32, 64>}, {pipeline_mode = #tpu.pipeline_mode<synchronous>, transform_indices = @transform_2, window_bounds = array<i64: 1, 64>}, {pipeline_mode = #tpu.pipeline_mode<synchronous>, transform_indices = @transform_3, window_bounds = array<i64: 64, 16>}, {pipeline_mode = #tpu.pipeline_mode<synchronous>, transform_indices = @transform_4, window_bounds = array<i64: 1, 16>}, {pipeline_mode = #tpu.pipeline_mode<synchronous>, transform_indices = @transform_5, window_bounds = array<i64: 16, 64>}, {pipeline_mode = #tpu.pipeline_mode<synchronous>, transform_indices = @transform_6, window_bounds = array<i64: 1, 64>}, {pipeline_mode = #tpu.pipeline_mode<synchronous>, transform_indices = @transform_7, window_bounds = array<i64: 64, 32>}, {pipeline_mode = #tpu.pipeline_mode<synchronous>, transform_indices = @transform_8, window_bounds = array<i64: 1, 32>}, {transform_indices = @transform_9, window_bounds = array<i64: 64, 32>}]} {
    %c0 = arith.constant 0 : index
    %c0_0 = arith.constant 0 : index
    %0 = vector.load %arg1[%c0, %c0_0] : memref<64x32xf32, #tpu.memory_space<vmem>>, vector<64x32xf32>
    %c0_1 = arith.constant 0 : index
    %c0_2 = arith.constant 0 : index
    %1 = vector.load %arg2[%c0_1, %c0_2] : memref<32x64xf32, #tpu.memory_space<vmem>>, vector<32x64xf32>
    %cst = arith.constant dense<0.000000e+00> : vector<64x64xf32>
    %2 = tpu.matmul %0, %1, %cst {dimension_numbers = #tpu.dot_dimension_numbers<[1], [0], [0], [1], [0, 0, 1, 1], [], []>} : vector<64x32xf32>, vector<32x64xf32>, vector<64x64xf32> -> vector<64x64xf32>
    %c0_3 = arith.constant 0 : index
    %c0_4 = arith.constant 0 : index
    %3 = vector.load %arg3[%c0_3, %c0_4] : memref<1x64xf32, #tpu.memory_space<vmem>>, vector<1x64xf32>
    %4 = vector.broadcast %3 : vector<1x64xf32> to vector<64x64xf32>
    %5 = arith.addf %2, %4 : vector<64x64xf32>
    %cst_5 = arith.constant 0.000000e+00 : f32
    %6 = vector.broadcast %cst_5 : f32 to vector<64x64xf32>
    %7 = arith.maximumf %5, %6 : vector<64x64xf32>
    %c0_6 = arith.constant 0 : index
    %c0_7 = arith.constant 0 : index
    %8 = vector.load %arg4[%c0_6, %c0_7] : memref<64x16xf32, #tpu.memory_space<vmem>>, vector<64x16xf32>
    %cst_8 = arith.constant dense<0.000000e+00> : vector<64x16xf32>
    %9 = tpu.matmul %7, %8, %cst_8 {dimension_numbers = #tpu.dot_dimension_numbers<[1], [0], [0], [1], [0, 0, 1, 1], [], []>} : vector<64x64xf32>, vector<64x16xf32>, vector<64x16xf32> -> vector<64x16xf32>
    %c0_9 = arith.constant 0 : index
    %c0_10 = arith.constant 0 : index
    %10 = vector.load %arg5[%c0_9, %c0_10] : memref<1x16xf32, #tpu.memory_space<vmem>>, vector<1x16xf32>
    %11 = vector.broadcast %10 : vector<1x16xf32> to vector<64x16xf32>
    %12 = arith.addf %9, %11 : vector<64x16xf32>
    %cst_11 = arith.constant 0.000000e+00 : f32
    %13 = vector.broadcast %cst_11 : f32 to vector<64x16xf32>
    %14 = arith.maximumf %12, %13 : vector<64x16xf32>
    %c0_12 = arith.constant 0 : index
    %c0_13 = arith.constant 0 : index
    %15 = vector.load %arg6[%c0_12, %c0_13] : memref<16x64xf32, #tpu.memory_space<vmem>>, vector<16x64xf32>
    %cst_14 = arith.constant dense<0.000000e+00> : vector<64x64xf32>
    %16 = tpu.matmul %14, %15, %cst_14 {dimension_numbers = #tpu.dot_dimension_numbers<[1], [0], [0], [1], [0, 0, 1, 1], [], []>} : vector<64x16xf32>, vector<16x64xf32>, vector<64x64xf32> -> vector<64x64xf32>
    %c0_15 = arith.constant 0 : index
    %c0_16 = arith.constant 0 : index
    %17 = vector.load %arg7[%c0_15, %c0_16] : memref<1x64xf32, #tpu.memory_space<vmem>>, vector<1x64xf32>
    %18 = vector.broadcast %17 : vector<1x64xf32> to vector<64x64xf32>
    %19 = arith.addf %16, %18 : vector<64x64xf32>
    %cst_17 = arith.constant 0.000000e+00 : f32
    %20 = vector.broadcast %cst_17 : f32 to vector<64x64xf32>
    %21 = arith.maximumf %19, %20 : vector<64x64xf32>
    %c0_18 = arith.constant 0 : index
    %c0_19 = arith.constant 0 : index
    %22 = vector.load %arg8[%c0_18, %c0_19] : memref<64x32xf32, #tpu.memory_space<vmem>>, vector<64x32xf32>
    %cst_20 = arith.constant dense<0.000000e+00> : vector<64x32xf32>
    %23 = tpu.matmul %21, %22, %cst_20 {dimension_numbers = #tpu.dot_dimension_numbers<[1], [0], [0], [1], [0, 0, 1, 1], [], []>} : vector<64x64xf32>, vector<64x32xf32>, vector<64x32xf32> -> vector<64x32xf32>
    %c0_21 = arith.constant 0 : index
    %c0_22 = arith.constant 0 : index
    %24 = vector.load %arg9[%c0_21, %c0_22] : memref<1x32xf32, #tpu.memory_space<vmem>>, vector<1x32xf32>
    %25 = vector.broadcast %24 : vector<1x32xf32> to vector<64x32xf32>
    %26 = arith.addf %23, %25 : vector<64x32xf32>
    %c0_23 = arith.constant 0 : index
    %c0_24 = arith.constant 0 : index
    %27 = vector.load %arg10[%c0_23, %c0_24] : memref<64x32xf32, #tpu.memory_space<vmem>>, vector<64x32xf32>
    tpu.vector_store %arg10[%c0_23, %c0_24], %26 {strides = array<i32>} : memref<64x32xf32, #tpu.memory_space<vmem>>, vector<64x32xf32>,
    return
  }
  func.func @transform_0(%arg0: i32) -> (i32, i32) {
    %c0_i32 = arith.constant 0 : i32
    %c0_i32_0 = arith.constant 0 : i32
    return %arg0, %c0_i32 : i32, i32
  }
  func.func @transform_1(%arg0: i32) -> (i32, i32) {
    %c0_i32 = arith.constant 0 : i32
    %c0_i32_0 = arith.constant 0 : i32
    %c0_i32_1 = arith.constant 0 : i32
    return %c0_i32, %c0_i32_0 : i32, i32
  }
  func.func @transform_2(%arg0: i32) -> (i32, i32) {
    %c0_i32 = arith.constant 0 : i32
    %c0_i32_0 = arith.constant 0 : i32
    %c0_i32_1 = arith.constant 0 : i32
    return %c0_i32, %c0_i32_0 : i32, i32
  }
  func.func @transform_3(%arg0: i32) -> (i32, i32) {
    %c0_i32 = arith.constant 0 : i32
    %c0_i32_0 = arith.constant 0 : i32
    %c0_i32_1 = arith.constant 0 : i32
    return %c0_i32, %c0_i32_0 : i32, i32
  }
  func.func @transform_4(%arg0: i32) -> (i32, i32) {
    %c0_i32 = arith.constant 0 : i32
    %c0_i32_0 = arith.constant 0 : i32
    %c0_i32_1 = arith.constant 0 : i32
    return %c0_i32, %c0_i32_0 : i32, i32
  }
  func.func @transform_5(%arg0: i32) -> (i32, i32) {
    %c0_i32 = arith.constant 0 : i32
    %c0_i32_0 = arith.constant 0 : i32
    %c0_i32_1 = arith.constant 0 : i32
    return %c0_i32, %c0_i32_0 : i32, i32
  }
  func.func @transform_6(%arg0: i32) -> (i32, i32) {
    %c0_i32 = arith.constant 0 : i32
    %c0_i32_0 = arith.constant 0 : i32
    %c0_i32_1 = arith.constant 0 : i32
    return %c0_i32, %c0_i32_0 : i32, i32
  }
  func.func @transform_7(%arg0: i32) -> (i32, i32) {
    %c0_i32 = arith.constant 0 : i32
    %c0_i32_0 = arith.constant 0 : i32
    %c0_i32_1 = arith.constant 0 : i32
    return %c0_i32, %c0_i32_0 : i32, i32
  }
  func.func @transform_8(%arg0: i32) -> (i32, i32) {
    %c0_i32 = arith.constant 0 : i32
    %c0_i32_0 = arith.constant 0 : i32
    %c0_i32_1 = arith.constant 0 : i32
    return %c0_i32, %c0_i32_0 : i32, i32
  }
  func.func @transform_9(%arg0: i32) -> (i32, i32) {
    %c0_i32 = arith.constant 0 : i32
    %c0_i32_0 = arith.constant 0 : i32
    return %arg0, %c0_i32 : i32, i32
  }
}

</mosaic_0001>

<llo_original>
// kernel: autoencoder_forward.1
$region0: #{autoencoder_forward.1}
  #allocation0 [shape = 'u32[]', space=smem, size = 0x4, offset = 0x4, fixed_abs, tag = 'smem constant byte address 0x4 - core index']
  #allocation1 [shape = 'u32[144,128]{1,0:T(1,128)}', space=vmem, size = 0x12000, scoped, tag = 'internal scratch']
  %s0 = inlined_call_operand.vmem [shape: f32[128,32], index: 0, kind: input, shape index: {}]
  %s1 = inlined_call_operand.vmem [shape: f32[32,64], index: 1, kind: input, shape index: {}]
  %s2 = inlined_call_operand.vmem [shape: f32[1,64], index: 2, kind: input, shape index: {}]
  %s3 = inlined_call_operand.vmem [shape: f32[64,16], index: 3, kind: input, shape index: {}]
  %s4 = inlined_call_operand.vmem [shape: f32[1,16], index: 4, kind: input, shape index: {}]
  %s5 = inlined_call_operand.vmem [shape: f32[16,64], index: 5, kind: input, shape index: {}]
  %s6 = inlined_call_operand.vmem [shape: f32[1,64], index: 6, kind: input, shape index: {}]
  %s7 = inlined_call_operand.vmem [shape: f32[64,32], index: 7, kind: input, shape index: {}]
  %s8 = inlined_call_operand.vmem [shape: f32[1,32], index: 8, kind: input, shape index: {}]
  %s9 = inlined_call_operand.vmem [shape: f32[128,32], index: 9, kind: output, shape index: {}]
  %s10 = sld [smem:[#allocation0]]
  $region69: #{autoencoder_forward.1} parent=0
    _
  %s12 = ssub.s32 1, %s10
  %s13 = scalar_select 0, %s12, %s10
  loop: start=0, step=1, limit=4
  $region2: #{autoencoder_forward.1} parent=0 // loop_pre_header
    _
  $region3: #{autoencoder_forward.1} parent=0 // loop_header
    %s15 = sphi 0, %s19
    %p16 = scmp.ge.s32.totalorder %s15, 4
    %s25 = sphi 0, %s27
    %s28 = sphi 0, %s25
    %s29 = sphi 0, %s28
    %s45 = sphi 0, %s29
    %s49 = sphi 0, %s49
    %s51 = sphi 0, %s49
    %s52 = sphi 0, %s51
    %s66 = sphi 0, %s52
    %s70 = sphi 0, %s70
    %s72 = sphi 0, %s70
    %s73 = sphi 0, %s72
    %s87 = sphi 0, %s73
    %s91 = sphi 0, %s91
    %s93 = sphi 0, %s91
    %s94 = sphi 0, %s93
    %s108 = sphi 0, %s94
    %s112 = sphi 0, %s112
    %s114 = sphi 0, %s112
    %s115 = sphi 0, %s114
    %s129 = sphi 0, %s115
    %s133 = sphi 0, %s133
    %s135 = sphi 0, %s133
    %s136 = sphi 0, %s135
    %s150 = sphi 0, %s136
    %s154 = sphi 0, %s154
    %s156 = sphi 0, %s154
    %s157 = sphi 0, %s156
    %s171 = sphi 0, %s157
    %s175 = sphi 0, %s175
    %s177 = sphi 0, %s175
    %s178 = sphi 0, %s177
    %s192 = sphi 0, %s178
    %s196 = sphi 0, %s196
    %s198 = sphi 0, %s196
    %s199 = sphi 0, %s198
    %s213 = sphi 0, %s199
    %s219 = sphi 0, %s221
    %s222 = sphi 0, %s219
    %s223 = sphi 0, %s222
    %s239 = sphi 0, %s223
  $region4: #{autoencoder_forward.1} parent=0 // loop_header_branch
    %18 = sbr.rel (%p16) target = $region8
  $region5: #{autoencoder_forward.1} parent=0 // loop_body
    %s20 = ssub.s32 %s15, 1
    %s21 = ssub.s32 %s15, 2
    %s22 = sadd.s32 %s15, 1
    %s23 = ssub.s32 %s15, %s22
    %p24 = scmp.eq.s32.totalorder %s23, 0
    %s26 = sadd.s32 %s25, 1
    %s27 = scalar_select %p24, %s25, %s26
    %p30 = pneg %p24
    %p31 = scmp.eq.s32.totalorder %s15, 1
    %p32 = por %p30, %p31
    %p33 = scmp.ne.s32.totalorder %s25, %s28
    %p34 = scmp.eq.s32.totalorder %s15, 0
    %p35 = por %p33, %p34
    %p36 = scmp.ne.s32.totalorder %s25, %s28
    %p37 = scmp.eq.s32.totalorder %s20, 1
    %p38 = por %p36, %p37
    %p39 = scmp.ne.s32.totalorder %s28, %s29
    %p40 = scmp.eq.s32.totalorder %s20, 0
    %p41 = por %p39, %p40
    %p42 = scmp.ne.s32.totalorder %s28, %s29
    %p43 = scmp.eq.s32.totalorder %s21, 1
    %p44 = por %p42, %p43
    %p46 = scmp.ne.s32.totalorder %s29, %s45
    %p47 = scmp.eq.s32.totalorder %s21, 0
    %p48 = por %p46, %p47
    %s50 = sadd.s32 %s49, 1
    %p53 = scmp.eq.s32.totalorder %s15, 1
    %p54 = scmp.ne.s32.totalorder %s49, %s51
    %p55 = scmp.eq.s32.totalorder %s15, 0
    %p56 = por %p54, %p55
    %p57 = scmp.ne.s32.totalorder %s49, %s51
    %p58 = scmp.eq.s32.totalorder %s20, 1
    %p59 = por %p57, %p58
    %p60 = scmp.ne.s32.totalorder %s51, %s52
    %p61 = scmp.eq.s32.totalorder %s20, 0
    %p62 = por %p60, %p61
    %p63 = scmp.ne.s32.totalorder %s51, %s52
    %p64 = scmp.eq.s32.totalorder %s21, 1
    %p65 = por %p63, %p64
    %p67 = scmp.ne.s32.totalorder %s52, %s66
    %p68 = scmp.eq.s32.totalorder %s21, 0
    %p69 = por %p67, %p68
    %s71 = sadd.s32 %s70, 1
    %p74 = scmp.eq.s32.totalorder %s15, 1
    %p75 = scmp.ne.s32.totalorder %s70, %s72
    %p76 = scmp.eq.s32.totalorder %s15, 0
    %p77 = por %p75, %p76
    %p78 = scmp.ne.s32.totalorder %s70, %s72
    %p79 = scmp.eq.s32.totalorder %s20, 1
    %p80 = por %p78, %p79
    %p81 = scmp.ne.s32.totalorder %s72, %s73
    %p82 = scmp.eq.s32.totalorder %s20, 0
    %p83 = por %p81, %p82
    %p84 = scmp.ne.s32.totalorder %s72, %s73
    %p85 = scmp.eq.s32.totalorder %s21, 1
    %p86 = por %p84, %p85
    %p88 = scmp.ne.s32.totalorder %s73, %s87
    %p89 = scmp.eq.s32.totalorder %s21, 0
    %p90 = por %p88, %p89
    %s92 = sadd.s32 %s91, 1
    %p95 = scmp.eq.s32.totalorder %s15, 1
    %p96 = scmp.ne.s32.totalorder %s91, %s93
    %p97 = scmp.eq.s32.totalorder %s15, 0
    %p98 = por %p96, %p97
    %p99 = scmp.ne.s32.totalorder %s91, %s93
    %p100 = scmp.eq.s32.totalorder %s20, 1
    %p101 = por %p99, %p100
    %p102 = scmp.ne.s32.totalorder %s93, %s94
    %p103 = scmp.eq.s32.totalorder %s20, 0
    %p104 = por %p102, %p103
    %p105 = scmp.ne.s32.totalorder %s93, %s94
    %p106 = scmp.eq.s32.totalorder %s21, 1
    %p107 = por %p105, %p106
    %p109 = scmp.ne.s32.totalorder %s94, %s108
    %p110 = scmp.eq.s32.totalorder %s21, 0
    %p111 = por %p109, %p110
    %s113 = sadd.s32 %s112, 1
    %p116 = scmp.eq.s32.totalorder %s15, 1
    %p117 = scmp.ne.s32.totalorder %s112, %s114
    %p118 = scmp.eq.s32.totalorder %s15, 0
    %p119 = por %p117, %p118
    %p120 = scmp.ne.s32.totalorder %s112, %s114
    %p121 = scmp.eq.s32.totalorder %s20, 1
    %p122 = por %p120, %p121
    %p123 = scmp.ne.s32.totalorder %s114, %s115
    %p124 = scmp.eq.s32.totalorder %s20, 0
    %p125 = por %p123, %p124
    %p126 = scmp.ne.s32.totalorder %s114, %s115
    %p127 = scmp.eq.s32.totalorder %s21, 1
    %p128 = por %p126, %p127
    %p130 = scmp.ne.s32.totalorder %s115, %s129
    %p131 = scmp.eq.s32.totalorder %s21, 0
    %p132 = por %p130, %p131
    %s134 = sadd.s32 %s133, 1
    %p137 = scmp.eq.s32.totalorder %s15, 1
    %p138 = scmp.ne.s32.totalorder %s133, %s135
    %p139 = scmp.eq.s32.totalorder %s15, 0
    %p140 = por %p138, %p139
    %p141 = scmp.ne.s32.totalorder %s133, %s135
    %p142 = scmp.eq.s32.totalorder %s20, 1
    %p143 = por %p141, %p142
    %p144 = scmp.ne.s32.totalorder %s135, %s136
    %p145 = scmp.eq.s32.totalorder %s20, 0
    %p146 = por %p144, %p145
    %p147 = scmp.ne.s32.totalorder %s135, %s136
    %p148 = scmp.eq.s32.totalorder %s21, 1
    %p149 = por %p147, %p148
    %p151 = scmp.ne.s32.totalorder %s136, %s150
    %p152 = scmp.eq.s32.totalorder %s21, 0
    %p153 = por %p151, %p152
    %s155 = sadd.s32 %s154, 1
    %p158 = scmp.eq.s32.totalorder %s15, 1
    %p159 = scmp.ne.s32.totalorder %s154, %s156
    %p160 = scmp.eq.s32.totalorder %s15, 0
    %p161 = por %p159, %p160
    %p162 = scmp.ne.s32.totalorder %s154, %s156
    %p163 = scmp.eq.s32.totalorder %s20, 1
    %p164 = por %p162, %p163
    %p165 = scmp.ne.s32.totalorder %s156, %s157
    %p166 = scmp.eq.s32.totalorder %s20, 0
    %p167 = por %p165, %p166
    %p168 = scmp.ne.s32.totalorder %s156, %s157
    %p169 = scmp.eq.s32.totalorder %s21, 1
    %p170 = por %p168, %p169
    %p172 = scmp.ne.s32.totalorder %s157, %s171
    %p173 = scmp.eq.s32.totalorder %s21, 0
    %p174 = por %p172, %p173
    %s176 = sadd.s32 %s175, 1
    %p179 = scmp.eq.s32.totalorder %s15, 1
    %p180 = scmp.ne.s32.totalorder %s175, %s177
    %p181 = scmp.eq.s32.totalorder %s15, 0
    %p182 = por %p180, %p181
    %p183 = scmp.ne.s32.totalorder %s175, %s177
    %p184 = scmp.eq.s32.totalorder %s20, 1
    %p185 = por %p183, %p184
    %p186 = scmp.ne.s32.totalorder %s177, %s178
    %p187 = scmp.eq.s32.totalorder %s20, 0
    %p188 = por %p186, %p187
    %p189 = scmp.ne.s32.totalorder %s177, %s178
    %p190 = scmp.eq.s32.totalorder %s21, 1
    %p191 = por %p189, %p190
    %p193 = scmp.ne.s32.totalorder %s178, %s192
    %p194 = scmp.eq.s32.totalorder %s21, 0
    %p195 = por %p193, %p194
    %s197 = sadd.s32 %s196, 1
    %p200 = scmp.eq.s32.totalorder %s15, 1
    %p201 = scmp.ne.s32.totalorder %s196, %s198
    %p202 = scmp.eq.s32.totalorder %s15, 0
    %p203 = por %p201, %p202
    %p204 = scmp.ne.s32.totalorder %s196, %s198
    %p205 = scmp.eq.s32.totalorder %s20, 1
    %p206 = por %p204, %p205
    %p207 = scmp.ne.s32.totalorder %s198, %s199
    %p208 = scmp.eq.s32.totalorder %s20, 0
    %p209 = por %p207, %p208
    %p210 = scmp.ne.s32.totalorder %s198, %s199
    %p211 = scmp.eq.s32.totalorder %s21, 1
    %p212 = por %p210, %p211
    %p214 = scmp.ne.s32.totalorder %s199, %s213
    %p215 = scmp.eq.s32.totalorder %s21, 0
    %p216 = por %p214, %p215
    %s217 = ssub.s32 %s15, %s22
    %p218 = scmp.eq.s32.totalorder %s217, 0
    %s220 = sadd.s32 %s219, 1
    %s221 = scalar_select %p218, %s219, %s220
    %p224 = pneg %p218
    %p225 = scmp.eq.s32.totalorder %s15, 1
    %p226 = por %p224, %p225
    %p227 = scmp.ne.s32.totalorder %s219, %s222
    %p228 = scmp.eq.s32.totalorder %s15, 0
    %p229 = por %p227, %p228
    %p230 = scmp.ne.s32.totalorder %s219, %s222
    %p231 = scmp.eq.s32.totalorder %s20, 1
    %p232 = por %p230, %p231
    %p233 = scmp.ne.s32.totalorder %s222, %s223
    %p234 = scmp.eq.s32.totalorder %s20, 0
    %p235 = por %p233, %p234
    %p236 = scmp.ne.s32.totalorder %s222, %s223
    %p237 = scmp.eq.s32.totalorder %s21, 1
    %p238 = por %p236, %p237
    %p240 = scmp.ne.s32.totalorder %s223, %s239
    %p241 = scmp.eq.s32.totalorder %s21, 0
    %p242 = por %p240, %p241
    %p243 = scmp.le.s32.totalorder 1, %s15
    %p244 = scmp.lt.s32.totalorder %s15, 3
    %p245 = pnand %p243, %p244
    %p246 = pneg %p245
    // Predicated region
    $region9: #{autoencoder_forward.1} parent=5 // pred_check
      _
    $region10: #{autoencoder_forward.1} parent=5 // pred_check_branch
      %248 = sbr.rel (%p245) target = $region12
    $region11: #{autoencoder_forward.1} parent=5 // pred_region
      %s249 = ssub.s32 %s15, 1
      // Predicated region
      $region13: #{autoencoder_forward.1} parent=11 // pred_check
        %p250 = pneg %p62
      $region14: #{autoencoder_forward.1} parent=11 // pred_check_branch
        %252 = sbr.rel (%p250) target = $region16
      $region15: #{autoencoder_forward.1} parent=11 // pred_region
        _
      $region16: #{autoencoder_forward.1} parent=11 // pred_fallthru
        _
      // Predicated region
      $region17: #{autoencoder_forward.1} parent=11 // pred_check
        %p253 = pneg %p83
      $region18: #{autoencoder_forward.1} parent=11 // pred_check_branch
        %255 = sbr.rel (%p253) target = $region20
      $region19: #{autoencoder_forward.1} parent=11 // pred_region
        _
      $region20: #{autoencoder_forward.1} parent=11 // pred_fallthru
        _
      // Predicated region
      $region21: #{autoencoder_forward.1} parent=11 // pred_check
        %p256 = pneg %p104
      $region22: #{autoencoder_forward.1} parent=11 // pred_check_branch
        %258 = sbr.rel (%p256) target = $region24
      $region23: #{autoencoder_forward.1} parent=11 // pred_region
        _
      $region24: #{autoencoder_forward.1} parent=11 // pred_fallthru
        _
      // Predicated region
      $region25: #{autoencoder_forward.1} parent=11 // pred_check
        %p259 = pneg %p125
      $region26: #{autoencoder_forward.1} parent=11 // pred_check_branch
        %261 = sbr.rel (%p259) target = $region28
      $region27: #{autoencoder_forward.1} parent=11 // pred_region
        _
      $region28: #{autoencoder_forward.1} parent=11 // pred_fallthru
        _
      // Predicated region
      $region29: #{autoencoder_forward.1} parent=11 // pred_check
        %p262 = pneg %p146
      $region30: #{autoencoder_forward.1} parent=11 // pred_check_branch
        %264 = sbr.rel (%p262) target = $region32
      $region31: #{autoencoder_forward.1} parent=11 // pred_region
        _
      $region32: #{autoencoder_forward.1} parent=11 // pred_fallthru
        _
      // Predicated region
      $region33: #{autoencoder_forward.1} parent=11 // pred_check
        %p265 = pneg %p167
      $region34: #{autoencoder_forward.1} parent=11 // pred_check_branch
        %267 = sbr.rel (%p265) target = $region36
      $region35: #{autoencoder_forward.1} parent=11 // pred_region
        _
      $region36: #{autoencoder_forward.1} parent=11 // pred_fallthru
        _
      // Predicated region
      $region37: #{autoencoder_forward.1} parent=11 // pred_check
        %p268 = pneg %p188
      $region38: #{autoencoder_forward.1} parent=11 // pred_check_branch
        %270 = sbr.rel (%p268) target = $region40
      $region39: #{autoencoder_forward.1} parent=11 // pred_region
        _
      $region40: #{autoencoder_forward.1} parent=11 // pred_fallthru
        _
      // Predicated region
      $region41: #{autoencoder_forward.1} parent=11 // pred_check
        %p271 = pneg %p209
      $region42: #{autoencoder_forward.1} parent=11 // pred_check_branch
        %273 = sbr.rel (%p271) target = $region44
      $region43: #{autoencoder_forward.1} parent=11 // pred_region
        _
      $region44: #{autoencoder_forward.1} parent=11 // pred_fallthru
        _
    $region12: #{autoencoder_forward.1} parent=5 // pred_fallthru
      _
    %p274 = scmp.lt.s32.totalorder %s15, 2
    // Predicated region
    $region45: #{autoencoder_forward.1} parent=5 // pred_check
      %p275 = pneg %p274
    $region46: #{autoencoder_forward.1} parent=5 // pred_check_branch
      %277 = sbr.rel (%p275) target = $region48
    $region47: #{autoencoder_forward.1} parent=5 // pred_region
      // Predicated region
      $region49: #{autoencoder_forward.1} parent=47 // pred_check
        %p278 = pneg %p35
      $region50: #{autoencoder_forward.1} parent=47 // pred_check_branch
        %280 = sbr.rel (%p278) target = $region52
      $region51: #{autoencoder_forward.1} parent=47 // pred_region
        %s281 = smul.u32 8, %s15
        %p282 = scmp.lt.s32.totalorder %s281, 15
        %s283 = scalar_select %p282, %s281, 15
        %s284 = smul.addr %s283, 8
        %s285 = scalar_lea.vmem %s0, %s284
        %s286 = smul.u32 8, %s15
      $region52: #{autoencoder_forward.1} parent=47 // pred_fallthru
        _
    $region48: #{autoencoder_forward.1} parent=5 // pred_fallthru
      _
    %p287 = scmp.le.s32.totalorder 1, %s15
    %p288 = scmp.lt.s32.totalorder %s15, 3
    %p289 = pnand %p287, %p288
    %p290 = pneg %p289
    // Predicated region
    $region53: #{autoencoder_forward.1} parent=5 // pred_check
      _
    $region54: #{autoencoder_forward.1} parent=5 // pred_check_branch
      %292 = sbr.rel (%p289) target = $region56
    $region55: #{autoencoder_forward.1} parent=5 // pred_region
      %s293 = ssub.s32 %s15, 1
      %s294 = smul.u32 8, %s20
      %p295 = scmp.lt.s32.totalorder %s294, 15
      %s296 = scalar_select %p295, %s294, 15
      %s297 = smul.addr %s296, 8
      %s298 = scalar_lea.vmem %s0, %s297
      %p299 = pneg %p41
      %p300 = pneg %p38
      %p301 = pneg %p62
      %p302 = pneg %p59
      %p303 = pneg %p83
      %p304 = pneg %p80
      %p305 = pneg %p104
      %p306 = pneg %p101
      %p307 = pneg %p125
      %p308 = pneg %p122
      %p309 = pneg %p146
      %p310 = pneg %p143
      %p311 = pneg %p167
      %p312 = pneg %p164
      %p313 = pneg %p188
      %p314 = pneg %p185
      %p315 = pneg %p209
      %p316 = pneg %p206
      %p317 = pneg %p235
      %p318 = pneg %p232
      %s319 = smul.u32 8, %s20
      %p320 = scmp.lt.s32.totalorder %s319, 15
      %s321 = scalar_select %p320, %s319, 15
      %s322 = smul.addr %s321, 8
      %s323 = scalar_lea.vmem %s9, %s322
      %s324 = smul.u32 8, %s20
      %p325 = scmp.lt.s32.totalorder %s324, 15
      %s326 = scalar_select %p325, %s324, 15
      %s327 = smul.addr %s326, 8
      %s328 = scalar_lea.vmem %s0, %s327
      %s329 = smul.u32 8, %s20
      %s330 = smul.u32 8, %s20
      %p331 = scmp.lt.s32.totalorder %s330, 15
      %s332 = scalar_select %p331, %s330, 15
      %s333 = smul.addr %s332, 8
      %s334 = scalar_lea.vmem %s9, %s333
      %s335 = smul.u32 8, %s20
      %v336 = vld [vmem:[%s328] sm:$0xff]
      %v337 = vld [vmem:[%s328 + $0x8] sm:$0xff]
      %v338 = vld [vmem:[%s328 + $0x10] sm:$0xff]
      %v339 = vld [vmem:[%s328 + $0x18] sm:$0xff]
      %v340 = vld [vmem:[%s328 + $0x20] sm:$0xff]
      %v341 = vld [vmem:[%s328 + $0x28] sm:$0xff]
      %v342 = vld [vmem:[%s328 + $0x30] sm:$0xff]
      %v343 = vld [vmem:[%s328 + $0x38] sm:$0xff]
      %v344 = vld [vmem:[%s1] sm:$0xff]
      %v345 = vld [vmem:[%s1 + $0x8] sm:$0xff]
      %v346 = vld [vmem:[%s1 + $0x10] sm:$0xff]
      %v347 = vld [vmem:[%s1 + $0x18] sm:$0xff]
      %v348 = vld [vmem:[%s2] sm:$0x1]
      %v350 = vlaneseq
      %v351 = vshrl.u32 %v350, 7
      %v352 = vsub.s32 0, %v351
      %v353 = vrot.slane %v348, %v352
      %vm355 = vcmask 261120
      %v357 = vsel %vm355, %v336, 0
      %v360 = vsel %vm355, %v337, 0
      %v363 = vsel %vm355, %v338, 0
      %v366 = vsel %vm355, %v339, 0
      %v369 = vsel %vm355, %v340, 0
      %v372 = vsel %vm355, %v341, 0
      %v375 = vsel %vm355, %v342, 0
      %v378 = vsel %vm355, %v343, 0
      %380 = vmatprep.subr.mxu0 0.0
      %381 = vmatpush1.msra.mxu0 %v344
      %382 = vmatprep.subr.mxu0 0.0
      %383 = vmatpush1.msra.mxu0 %v345
      %384 = vmatprep.subr.mxu0 0.0
      %385 = vmatpush1.msra.mxu0 %v346
      %386 = vmatprep.subr.mxu0 0.0
      %387 = vmatpush1.msra.mxu0 %v347
      %388 = vmatprep.subr.mxu0 0.0
      %389 = vmatpush1.msra.mxu0 0.0
      %390 = vmatprep.subr.mxu0 0.0
      %391 = vmatpush1.msra.mxu0 0.0
      %392 = vmatprep.subr.mxu0 0.0
      %393 = vmatpush1.msra.mxu0 0.0
      %394 = vmatprep.subr.mxu0 0.0
      %395 = vmatpush1.msra.mxu0 0.0
      %396 = vmatprep.subr.mxu0 0.0
      %397 = vmatpush1.msra.mxu0 0.0
      %398 = vmatprep.subr.mxu0 0.0
      %399 = vmatpush1.msra.mxu0 0.0
      %400 = vmatprep.subr.mxu0 0.0
      %401 = vmatpush1.msra.mxu0 0.0
      %402 = vmatprep.subr.mxu0 0.0
      %403 = vmatpush1.msra.mxu0 0.0
      %404 = vmatprep.subr.mxu0 0.0
      %405 = vmatpush1.msra.mxu0 0.0
      %406 = vmatprep.subr.mxu0 0.0
      %407 = vmatpush1.msra.mxu0 0.0
      %408 = vmatprep.subr.mxu0 0.0
      %409 = vmatpush1.msra.mxu0 0.0
      %410 = vmatprep.subr.mxu0 0.0
      %411 = vmatpush1.msra.mxu0 0.0
      %412 = vmatprep.subr.mxu0 0.0
      %413 = vmatpush1.msra.mxu0 0.0
      %414 = vmatprep.subr.mxu0 0.0
      %415 = vmatpush1.msra.mxu0 0.0
      %416 = vmatprep.subr.mxu0 0.0
      %417 = vmatpush1.msra.mxu0 0.0
      %418 = vmatprep.subr.mxu0 0.0
      %419 = vmatpush1.msra.mxu0 0.0
      %420 = vmatprep.subr.mxu0 0.0
      %421 = vmatpush1.msra.mxu0 0.0
      %422 = vmatprep.subr.mxu0 0.0
      %423 = vmatpush1.msra.mxu0 0.0
      %424 = vmatprep.subr.mxu0 0.0
      %425 = vmatpush1.msra.mxu0 0.0
      %426 = vmatprep.subr.mxu0 0.0
      %427 = vmatpush1.msra.mxu0 0.0
      %428 = vmatprep.subr.mxu0 0.0
      %429 = vmatpush1.msra.mxu0 0.0
      %430 = vmatprep.subr.mxu0 0.0
      %431 = vmatpush1.msra.mxu0 0.0
      %432 = vmatprep.subr.mxu0 0.0
      %433 = vmatpush1.msra.mxu0 0.0
      %434 = vmatprep.subr.mxu0 0.0
      %435 = vmatpush1.msra.mxu0 0.0
      %436 = vmatprep.subr.mxu0 0.0
      %437 = vmatpush1.msra.mxu0 0.0
      %438 = vmatprep.subr.mxu0 0.0
      %439 = vmatpush1.msra.mxu0 0.0
      %440 = vmatprep.subr.mxu0 0.0
      %441 = vmatpush1.msra.mxu0 0.0
      %442 = vmatprep.subr.mxu0 0.0
      %443 = vmatpush1.msra.mxu0 0.0
      %444 = vmatprep.mubr.f32.mxu0 0.0
      %445 = vmatmul.mubr.f32.gmra.mrb[0].mxu0 %v357
      %v446 = vpop.f32.mrb[0].mxu0
      %v447 = vadd.f32 %v353, %v446
      %v448 = vpop.f32.mrb[0].mxu0
      %449 = vmatprep.mubr.f32.mxu0 0.0
      %450 = vmatmul.mubr.f32.gmra.mrb[0].mxu0 %v360
      %v451 = vpop.f32.mrb[0].mxu0
      %v452 = vadd.f32 %v353, %v451
      %v453 = vpop.f32.mrb[0].mxu0
      %454 = vmatprep.mubr.f32.mxu0 0.0
      %455 = vmatmul.mubr.f32.gmra.mrb[0].mxu0 %v363
      %v456 = vpop.f32.mrb[0].mxu0
      %v457 = vadd.f32 %v353, %v456
      %v458 = vpop.f32.mrb[0].mxu0
      %459 = vmatprep.mubr.f32.mxu0 0.0
      %460 = vmatmul.mubr.f32.gmra.mrb[0].mxu0 %v366
      %v461 = vpop.f32.mrb[0].mxu0
      %v462 = vadd.f32 %v353, %v461
      %v463 = vpop.f32.mrb[0].mxu0
      %464 = vmatprep.mubr.f32.mxu0 0.0
      %465 = vmatmul.mubr.f32.gmra.mrb[0].mxu0 %v369
      %v466 = vpop.f32.mrb[0].mxu0
      %v467 = vadd.f32 %v353, %v466
      %v468 = vpop.f32.mrb[0].mxu0
      %469 = vmatprep.mubr.f32.mxu0 0.0
      %470 = vmatmul.mubr.f32.gmra.mrb[0].mxu0 %v372
      %v471 = vpop.f32.mrb[0].mxu0
      %v472 = vadd.f32 %v353, %v471
      %v473 = vpop.f32.mrb[0].mxu0
      %474 = vmatprep.mubr.f32.mxu0 0.0
      %475 = vmatmul.mubr.f32.gmra.mrb[0].mxu0 %v375
      %v476 = vpop.f32.mrb[0].mxu0
      %v477 = vadd.f32 %v353, %v476
      %v478 = vpop.f32.mrb[0].mxu0
      %479 = vmatprep.mubr.f32.mxu0 0.0
      %480 = vmatmul.mubr.f32.gmra.mrb[0].mxu0 %v378
      %v481 = vpop.f32.mrb[0].mxu0
      %v482 = vadd.f32 %v353, %v481
      %v483 = vpop.f32.mrb[0].mxu0
      %484 = vdwg.mxu0
      %v485 = vmax.f32 %v447, 0.0
      %v486 = vmax.f32 %v452, 0.0
      %v487 = vmax.f32 %v457, 0.0
      %v488 = vmax.f32 %v462, 0.0
      %v489 = vmax.f32 %v467, 0.0
      %v490 = vmax.f32 %v472, 0.0
      %v491 = vmax.f32 %v477, 0.0
      %v492 = vmax.f32 %v482, 0.0
      %v493 = vld [vmem:[%s3] sm:$0xff]
      %v494 = vld [vmem:[%s3 + $0x8] sm:$0xff]
      %v495 = vld [vmem:[%s3 + $0x10] sm:$0xff]
      %v496 = vld [vmem:[%s3 + $0x18] sm:$0xff]
      %v497 = vld [vmem:[%s3 + $0x20] sm:$0xff]
      %v498 = vld [vmem:[%s3 + $0x28] sm:$0xff]
      %v499 = vld [vmem:[%s3 + $0x30] sm:$0xff]
      %v500 = vld [vmem:[%s3 + $0x38] sm:$0xff]
      %v501 = vld [vmem:[%s4] sm:$0x1]
      %v503 = vlaneseq
      %v504 = vshrl.u32 %v503, 7
      %v505 = vsub.s32 0, %v504
      %v506 = vrot.slane %v501, %v505
      %vm508 = vcmask 523264
      %v510 = vsel %vm508, %v485, 0
      %v513 = vsel %vm508, %v486, 0
      %v516 = vsel %vm508, %v487, 0
      %v519 = vsel %vm508, %v488, 0
      %v522 = vsel %vm508, %v489, 0
      %v525 = vsel %vm508, %v490, 0
      %v528 = vsel %vm508, %v491, 0
      %v531 = vsel %vm508, %v492, 0
      %533 = vmatprep.subr.mxu0 0.0
      %534 = vmatpush1.msra.mxu0 %v493
      %535 = vmatprep.subr.mxu0 0.0
      %536 = vmatpush1.msra.mxu0 %v494
      %537 = vmatprep.subr.mxu0 0.0
      %538 = vmatpush1.msra.mxu0 %v495
      %539 = vmatprep.subr.mxu0 0.0
      %540 = vmatpush1.msra.mxu0 %v496
      %541 = vmatprep.subr.mxu0 0.0
      %542 = vmatpush1.msra.mxu0 %v497
      %543 = vmatprep.subr.mxu0 0.0
      %544 = vmatpush1.msra.mxu0 %v498
      %545 = vmatprep.subr.mxu0 0.0
      %546 = vmatpush1.msra.mxu0 %v499
      %547 = vmatprep.subr.mxu0 0.0
      %548 = vmatpush1.msra.mxu0 %v500
      %549 = vmatprep.subr.mxu0 0.0
      %550 = vmatpush1.msra.mxu0 0.0
      %551 = vmatprep.subr.mxu0 0.0
      %552 = vmatpush1.msra.mxu0 0.0
      %553 = vmatprep.subr.mxu0 0.0
      %554 = vmatpush1.msra.mxu0 0.0
      %555 = vmatprep.subr.mxu0 0.0
      %556 = vmatpush1.msra.mxu0 0.0
      %557 = vmatprep.subr.mxu0 0.0
      %558 = vmatpush1.msra.mxu0 0.0
      %559 = vmatprep.subr.mxu0 0.0
      %560 = vmatpush1.msra.mxu0 0.0
      %561 = vmatprep.subr.mxu0 0.0
      %562 = vmatpush1.msra.mxu0 0.0
      %563 = vmatprep.subr.mxu0 0.0
      %564 = vmatpush1.msra.mxu0 0.0
      %565 = vmatprep.subr.mxu0 0.0
      %566 = vmatpush1.msra.mxu0 0.0
      %567 = vmatprep.subr.mxu0 0.0
      %568 = vmatpush1.msra.mxu0 0.0
      %569 = vmatprep.subr.mxu0 0.0
      %570 = vmatpush1.msra.mxu0 0.0
      %571 = vmatprep.subr.mxu0 0.0
      %572 = vmatpush1.msra.mxu0 0.0
      %573 = vmatprep.subr.mxu0 0.0
      %574 = vmatpush1.msra.mxu0 0.0
      %575 = vmatprep.subr.mxu0 0.0
      %576 = vmatpush1.msra.mxu0 0.0
      %577 = vmatprep.subr.mxu0 0.0
      %578 = vmatpush1.msra.mxu0 0.0
      %579 = vmatprep.subr.mxu0 0.0
      %580 = vmatpush1.msra.mxu0 0.0
      %581 = vmatprep.subr.mxu0 0.0
      %582 = vmatpush1.msra.mxu0 0.0
      %583 = vmatprep.subr.mxu0 0.0
      %584 = vmatpush1.msra.mxu0 0.0
      %585 = vmatprep.subr.mxu0 0.0
      %586 = vmatpush1.msra.mxu0 0.0
      %587 = vmatprep.subr.mxu0 0.0
      %588 = vmatpush1.msra.mxu0 0.0
      %589 = vmatprep.subr.mxu0 0.0
      %590 = vmatpush1.msra.mxu0 0.0
      %591 = vmatprep.subr.mxu0 0.0
      %592 = vmatpush1.msra.mxu0 0.0
      %593 = vmatprep.subr.mxu0 0.0
      %594 = vmatpush1.msra.mxu0 0.0
      %595 = vmatprep.subr.mxu0 0.0
      %596 = vmatpush1.msra.mxu0 0.0
      %597 = vmatprep.mubr.f32.mxu0 0.0
      %598 = vmatmul.mubr.f32.gmra.mrb[0].mxu0 %v510
      %v599 = vpop.f32.mrb[0].mxu0
      %v600 = vadd.f32 %v506, %v599
      %v601 = vpop.f32.mrb[0].mxu0
      %602 = vmatprep.mubr.f32.mxu0 0.0
      %603 = vmatmul.mubr.f32.gmra.mrb[0].mxu0 %v513
      %v604 = vpop.f32.mrb[0].mxu0
      %v605 = vadd.f32 %v506, %v604
      %v606 = vpop.f32.mrb[0].mxu0
      %607 = vmatprep.mubr.f32.mxu0 0.0
      %608 = vmatmul.mubr.f32.gmra.mrb[0].mxu0 %v516
      %v609 = vpop.f32.mrb[0].mxu0
      %v610 = vadd.f32 %v506, %v609
      %v611 = vpop.f32.mrb[0].mxu0
      %612 = vmatprep.mubr.f32.mxu0 0.0
      %613 = vmatmul.mubr.f32.gmra.mrb[0].mxu0 %v519
      %v614 = vpop.f32.mrb[0].mxu0
      %v615 = vadd.f32 %v506, %v614
      %v616 = vpop.f32.mrb[0].mxu0
      %617 = vmatprep.mubr.f32.mxu0 0.0
      %618 = vmatmul.mubr.f32.gmra.mrb[0].mxu0 %v522
      %v619 = vpop.f32.mrb[0].mxu0
      %v620 = vadd.f32 %v506, %v619
      %v621 = vpop.f32.mrb[0].mxu0
      %622 = vmatprep.mubr.f32.mxu0 0.0
      %623 = vmatmul.mubr.f32.gmra.mrb[0].mxu0 %v525
      %v624 = vpop.f32.mrb[0].mxu0
      %v625 = vadd.f32 %v506, %v624
      %v626 = vpop.f32.mrb[0].mxu0
      %627 = vmatprep.mubr.f32.mxu0 0.0
      %628 = vmatmul.mubr.f32.gmra.mrb[0].mxu0 %v528
      %v629 = vpop.f32.mrb[0].mxu0
      %v630 = vadd.f32 %v506, %v629
      %v631 = vpop.f32.mrb[0].mxu0
      %632 = vmatprep.mubr.f32.mxu0 0.0
      %633 = vmatmul.mubr.f32.gmra.mrb[0].mxu0 %v531
      %v634 = vpop.f32.mrb[0].mxu0
      %v635 = vadd.f32 %v506, %v634
      %v636 = vpop.f32.mrb[0].mxu0
      %637 = vdwg.mxu0
      %v638 = vmax.f32 %v600, 0.0
      %v639 = vmax.f32 %v605, 0.0
      %v640 = vmax.f32 %v610, 0.0
      %v641 = vmax.f32 %v615, 0.0
      %v642 = vmax.f32 %v620, 0.0
      %v643 = vmax.f32 %v625, 0.0
      %v644 = vmax.f32 %v630, 0.0
      %v645 = vmax.f32 %v635, 0.0
      %v646 = vld [vmem:[%s5] sm:$0xff]
      %v647 = vld [vmem:[%s5 + $0x8] sm:$0xff]
      %v648 = vld [vmem:[%s6] sm:$0x1]
      %v650 = vlaneseq
      %v651 = vshrl.u32 %v650, 7
      %v652 = vsub.s32 0, %v651
      %v653 = vrot.slane %v648, %v652
      %vm655 = vcmask 130048
      %v657 = vsel %vm655, %v638, 0
      %v660 = vsel %vm655, %v639, 0
      %v663 = vsel %vm655, %v640, 0
      %v666 = vsel %vm655, %v641, 0
      %v669 = vsel %vm655, %v642, 0
      %v672 = vsel %vm655, %v643, 0
      %v675 = vsel %vm655, %v644, 0
      %v678 = vsel %vm655, %v645, 0
      %680 = vmatprep.subr.mxu0 0.0
      %681 = vmatpush1.msra.mxu0 %v646
      %682 = vmatprep.subr.mxu0 0.0
      %683 = vmatpush1.msra.mxu0 %v647
      %684 = vmatprep.subr.mxu0 0.0
      %685 = vmatpush1.msra.mxu0 0.0
      %686 = vmatprep.subr.mxu0 0.0
      %687 = vmatpush1.msra.mxu0 0.0
      %688 = vmatprep.subr.mxu0 0.0
      %689 = vmatpush1.msra.mxu0 0.0
      %690 = vmatprep.subr.mxu0 0.0
      %691 = vmatpush1.msra.mxu0 0.0
      %692 = vmatprep.subr.mxu0 0.0
      %693 = vmatpush1.msra.mxu0 0.0
      %694 = vmatprep.subr.mxu0 0.0
      %695 = vmatpush1.msra.mxu0 0.0
      %696 = vmatprep.subr.mxu0 0.0
      %697 = vmatpush1.msra.mxu0 0.0
      %698 = vmatprep.subr.mxu0 0.0
      %699 = vmatpush1.msra.mxu0 0.0
      %700 = vmatprep.subr.mxu0 0.0
      %701 = vmatpush1.msra.mxu0 0.0
      %702 = vmatprep.subr.mxu0 0.0
      %703 = vmatpush1.msra.mxu0 0.0
      %704 = vmatprep.subr.mxu0 0.0
      %705 = vmatpush1.msra.mxu0 0.0
      %706 = vmatprep.subr.mxu0 0.0
      %707 = vmatpush1.msra.mxu0 0.0
      %708 = vmatprep.subr.mxu0 0.0
      %709 = vmatpush1.msra.mxu0 0.0
      %710 = vmatprep.subr.mxu0 0.0
      %711 = vmatpush1.msra.mxu0 0.0
      %712 = vmatprep.subr.mxu0 0.0
      %713 = vmatpush1.msra.mxu0 0.0
      %714 = vmatprep.subr.mxu0 0.0
      %715 = vmatpush1.msra.mxu0 0.0
      %716 = vmatprep.subr.mxu0 0.0
      %717 = vmatpush1.msra.mxu0 0.0
      %718 = vmatprep.subr.mxu0 0.0
      %719 = vmatpush1.msra.mxu0 0.0
      %720 = vmatprep.subr.mxu0 0.0
      %721 = vmatpush1.msra.mxu0 0.0
      %722 = vmatprep.subr.mxu0 0.0
      %723 = vmatpush1.msra.mxu0 0.0
      %724 = vmatprep.subr.mxu0 0.0
      %725 = vmatpush1.msra.mxu0 0.0
      %726 = vmatprep.subr.mxu0 0.0
      %727 = vmatpush1.msra.mxu0 0.0
      %728 = vmatprep.subr.mxu0 0.0
      %729 = vmatpush1.msra.mxu0 0.0
      %730 = vmatprep.subr.mxu0 0.0
      %731 = vmatpush1.msra.mxu0 0.0
      %732 = vmatprep.subr.mxu0 0.0
      %733 = vmatpush1.msra.mxu0 0.0
      %734 = vmatprep.subr.mxu0 0.0
      %735 = vmatpush1.msra.mxu0 0.0
      %736 = vmatprep.subr.mxu0 0.0
      %737 = vmatpush1.msra.mxu0 0.0
      %738 = vmatprep.subr.mxu0 0.0
      %739 = vmatpush1.msra.mxu0 0.0
      %740 = vmatprep.subr.mxu0 0.0
      %741 = vmatpush1.msra.mxu0 0.0
      %742 = vmatprep.subr.mxu0 0.0
      %743 = vmatpush1.msra.mxu0 0.0
      %744 = vmatprep.mubr.f32.mxu0 0.0
      %745 = vmatmul.mubr.f32.gmra.mrb[0].mxu0 %v657
      %v746 = vpop.f32.mrb[0].mxu0
      %v747 = vadd.f32 %v653, %v746
      %v748 = vpop.f32.mrb[0].mxu0
      %749 = vmatprep.mubr.f32.mxu0 0.0
      %750 = vmatmul.mubr.f32.gmra.mrb[0].mxu0 %v660
      %v751 = vpop.f32.mrb[0].mxu0
      %v752 = vadd.f32 %v653, %v751
      %v753 = vpop.f32.mrb[0].mxu0
      %754 = vmatprep.mubr.f32.mxu0 0.0
      %755 = vmatmul.mubr.f32.gmra.mrb[0].mxu0 %v663
      %v756 = vpop.f32.mrb[0].mxu0
      %v757 = vadd.f32 %v653, %v756
      %v758 = vpop.f32.mrb[0].mxu0
      %759 = vmatprep.mubr.f32.mxu0 0.0
      %760 = vmatmul.mubr.f32.gmra.mrb[0].mxu0 %v666
      %v761 = vpop.f32.mrb[0].mxu0
      %v762 = vadd.f32 %v653, %v761
      %v763 = vpop.f32.mrb[0].mxu0
      %764 = vmatprep.mubr.f32.mxu0 0.0
      %765 = vmatmul.mubr.f32.gmra.mrb[0].mxu0 %v669
      %v766 = vpop.f32.mrb[0].mxu0
      %v767 = vadd.f32 %v653, %v766
      %v768 = vpop.f32.mrb[0].mxu0
      %769 = vmatprep.mubr.f32.mxu0 0.0
      %770 = vmatmul.mubr.f32.gmra.mrb[0].mxu0 %v672
      %v771 = vpop.f32.mrb[0].mxu0
      %v772 = vadd.f32 %v653, %v771
      %v773 = vpop.f32.mrb[0].mxu0
      %774 = vmatprep.mubr.f32.mxu0 0.0
      %775 = vmatmul.mubr.f32.gmra.mrb[0].mxu0 %v675
      %v776 = vpop.f32.mrb[0].mxu0
      %v777 = vadd.f32 %v653, %v776
      %v778 = vpop.f32.mrb[0].mxu0
      %779 = vmatprep.mubr.f32.mxu0 0.0
      %780 = vmatmul.mubr.f32.gmra.mrb[0].mxu0 %v678
      %v781 = vpop.f32.mrb[0].mxu0
      %v782 = vadd.f32 %v653, %v781
      %v783 = vpop.f32.mrb[0].mxu0
      %784 = vdwg.mxu0
      %v785 = vmax.f32 %v747, 0.0
      %v786 = vmax.f32 %v752, 0.0
      %v787 = vmax.f32 %v757, 0.0
      %v788 = vmax.f32 %v762, 0.0
      %v789 = vmax.f32 %v767, 0.0
      %v790 = vmax.f32 %v772, 0.0
      %v791 = vmax.f32 %v777, 0.0
      %v792 = vmax.f32 %v782, 0.0
      %v793 = vld [vmem:[%s7] sm:$0xff]
      %v794 = vld [vmem:[%s7 + $0x8] sm:$0xff]
      %v795 = vld [vmem:[%s7 + $0x10] sm:$0xff]
      %v796 = vld [vmem:[%s7 + $0x18] sm:$0xff]
      %v797 = vld [vmem:[%s7 + $0x20] sm:$0xff]
      %v798 = vld [vmem:[%s7 + $0x28] sm:$0xff]
      %v799 = vld [vmem:[%s7 + $0x30] sm:$0xff]
      %v800 = vld [vmem:[%s7 + $0x38] sm:$0xff]
      %v801 = vld [vmem:[%s8] sm:$0x1]
      %v803 = vlaneseq
      %v804 = vshrl.u32 %v803, 7
      %v805 = vsub.s32 0, %v804
      %v806 = vrot.slane %v801, %v805
      %v809 = vsel %vm508, %v785, 0
      %v812 = vsel %vm508, %v786, 0
      %v815 = vsel %vm508, %v787, 0
      %v818 = vsel %vm508, %v788, 0
      %v821 = vsel %vm508, %v789, 0
      %v824 = vsel %vm508, %v790, 0
      %v827 = vsel %vm508, %v791, 0
      %v830 = vsel %vm508, %v792, 0
      %832 = vmatprep.subr.mxu0 0.0
      %833 = vmatpush1.msra.mxu0 %v793
      %834 = vmatprep.subr.mxu0 0.0
      %835 = vmatpush1.msra.mxu0 %v794
      %836 = vmatprep.subr.mxu0 0.0
      %837 = vmatpush1.msra.mxu0 %v795
      %838 = vmatprep.subr.mxu0 0.0
      %839 = vmatpush1.msra.mxu0 %v796
      %840 = vmatprep.subr.mxu0 0.0
      %841 = vmatpush1.msra.mxu0 %v797
      %842 = vmatprep.subr.mxu0 0.0
      %843 = vmatpush1.msra.mxu0 %v798
      %844 = vmatprep.subr.mxu0 0.0
      %845 = vmatpush1.msra.mxu0 %v799
      %846 = vmatprep.subr.mxu0 0.0
      %847 = vmatpush1.msra.mxu0 %v800
      %848 = vmatprep.subr.mxu0 0.0
      %849 = vmatpush1.msra.mxu0 0.0
      %850 = vmatprep.subr.mxu0 0.0
      %851 = vmatpush1.msra.mxu0 0.0
      %852 = vmatprep.subr.mxu0 0.0
      %853 = vmatpush1.msra.mxu0 0.0
      %854 = vmatprep.subr.mxu0 0.0
      %855 = vmatpush1.msra.mxu0 0.0
      %856 = vmatprep.subr.mxu0 0.0
      %857 = vmatpush1.msra.mxu0 0.0
      %858 = vmatprep.subr.mxu0 0.0
      %859 = vmatpush1.msra.mxu0 0.0
      %860 = vmatprep.subr.mxu0 0.0
      %861 = vmatpush1.msra.mxu0 0.0
      %862 = vmatprep.subr.mxu0 0.0
      %863 = vmatpush1.msra.mxu0 0.0
      %864 = vmatprep.subr.mxu0 0.0
      %865 = vmatpush1.msra.mxu0 0.0
      %866 = vmatprep.subr.mxu0 0.0
      %867 = vmatpush1.msra.mxu0 0.0
      %868 = vmatprep.subr.mxu0 0.0
      %869 = vmatpush1.msra.mxu0 0.0
      %870 = vmatprep.subr.mxu0 0.0
      %871 = vmatpush1.msra.mxu0 0.0
      %872 = vmatprep.subr.mxu0 0.0
      %873 = vmatpush1.msra.mxu0 0.0
      %874 = vmatprep.subr.mxu0 0.0
      %875 = vmatpush1.msra.mxu0 0.0
      %876 = vmatprep.subr.mxu0 0.0
      %877 = vmatpush1.msra.mxu0 0.0
      %878 = vmatprep.subr.mxu0 0.0
      %879 = vmatpush1.msra.mxu0 0.0
      %880 = vmatprep.subr.mxu0 0.0
      %881 = vmatpush1.msra.mxu0 0.0
      %882 = vmatprep.subr.mxu0 0.0
      %883 = vmatpush1.msra.mxu0 0.0
      %884 = vmatprep.subr.mxu0 0.0
      %885 = vmatpush1.msra.mxu0 0.0
      %886 = vmatprep.subr.mxu0 0.0
      %887 = vmatpush1.msra.mxu0 0.0
      %888 = vmatprep.subr.mxu0 0.0
      %889 = vmatpush1.msra.mxu0 0.0
      %890 = vmatprep.subr.mxu0 0.0
      %891 = vmatpush1.msra.mxu0 0.0
      %892 = vmatprep.subr.mxu0 0.0
      %893 = vmatpush1.msra.mxu0 0.0
      %894 = vmatprep.subr.mxu0 0.0
      %895 = vmatpush1.msra.mxu0 0.0
      %896 = vmatprep.mubr.f32.mxu0 0.0
      %897 = vmatmul.mubr.f32.gmra.mrb[0].mxu0 %v809
      %v898 = vpop.f32.mrb[0].mxu0
      %v899 = vadd.f32 %v806, %v898
      %v900 = vpop.f32.mrb[0].mxu0
      %901 = vmatprep.mubr.f32.mxu0 0.0
      %902 = vmatmul.mubr.f32.gmra.mrb[0].mxu0 %v812
      %v903 = vpop.f32.mrb[0].mxu0
      %v904 = vadd.f32 %v806, %v903
      %v905 = vpop.f32.mrb[0].mxu0
      %906 = vmatprep.mubr.f32.mxu0 0.0
      %907 = vmatmul.mubr.f32.gmra.mrb[0].mxu0 %v815
      %v908 = vpop.f32.mrb[0].mxu0
      %v909 = vadd.f32 %v806, %v908
      %v910 = vpop.f32.mrb[0].mxu0
      %911 = vmatprep.mubr.f32.mxu0 0.0
      %912 = vmatmul.mubr.f32.gmra.mrb[0].mxu0 %v818
      %v913 = vpop.f32.mrb[0].mxu0
      %v914 = vadd.f32 %v806, %v913
      %v915 = vpop.f32.mrb[0].mxu0
      %916 = vmatprep.mubr.f32.mxu0 0.0
      %917 = vmatmul.mubr.f32.gmra.mrb[0].mxu0 %v821
      %v918 = vpop.f32.mrb[0].mxu0
      %v919 = vadd.f32 %v806, %v918
      %v920 = vpop.f32.mrb[0].mxu0
      %921 = vmatprep.mubr.f32.mxu0 0.0
      %922 = vmatmul.mubr.f32.gmra.mrb[0].mxu0 %v824
      %v923 = vpop.f32.mrb[0].mxu0
      %v924 = vadd.f32 %v806, %v923
      %v925 = vpop.f32.mrb[0].mxu0
      %926 = vmatprep.mubr.f32.mxu0 0.0
      %927 = vmatmul.mubr.f32.gmra.mrb[0].mxu0 %v827
      %v928 = vpop.f32.mrb[0].mxu0
      %v929 = vadd.f32 %v806, %v928
      %v930 = vpop.f32.mrb[0].mxu0
      %931 = vmatprep.mubr.f32.mxu0 0.0
      %932 = vmatmul.mubr.f32.gmra.mrb[0].mxu0 %v830
      %v933 = vpop.f32.mrb[0].mxu0
      %v934 = vadd.f32 %v806, %v933
      %v935 = vpop.f32.mrb[0].mxu0
      %936 = vdwg.mxu0
      %937 = vst.msk [vmem:[%s334] sm:$0xff] %vm355, %v899
      %938 = vst.msk [vmem:[%s334 + $0x8] sm:$0xff] %vm355, %v904
      %939 = vst.msk [vmem:[%s334 + $0x10] sm:$0xff] %vm355, %v909
      %940 = vst.msk [vmem:[%s334 + $0x18] sm:$0xff] %vm355, %v914
      %941 = vst.msk [vmem:[%s334 + $0x20] sm:$0xff] %vm355, %v919
      %942 = vst.msk [vmem:[%s334 + $0x28] sm:$0xff] %vm355, %v924
      %943 = vst.msk [vmem:[%s334 + $0x30] sm:$0xff] %vm355, %v929
      %944 = vst.msk [vmem:[%s334 + $0x38] sm:$0xff] %vm355, %v934
      %s945 = smul.u32 8, %s20
      %p946 = scmp.lt.s32.totalorder %s945, 15
      %s947 = scalar_select %p946, %s945, 15
      %s948 = smul.addr %s947, 8
      %s949 = scalar_lea.vmem %s9, %s948
      // Predicated region
      $region57: #{autoencoder_forward.1} parent=55 // pred_check
        %p950 = pneg %p232
      $region58: #{autoencoder_forward.1} parent=55 // pred_check_branch
        %952 = sbr.rel (%p950) target = $region60
      $region59: #{autoencoder_forward.1} parent=55 // pred_region
        %s953 = smul.u32 8, %s20
      $region60: #{autoencoder_forward.1} parent=55 // pred_fallthru
        _
    $region56: #{autoencoder_forward.1} parent=5 // pred_fallthru
      _
    %p954 = scmp.le.s32.totalorder 2, %s15
    // Predicated region
    $region61: #{autoencoder_forward.1} parent=5 // pred_check
      %p955 = pneg %p954
    $region62: #{autoencoder_forward.1} parent=5 // pred_check_branch
      %957 = sbr.rel (%p955) target = $region64
    $region63: #{autoencoder_forward.1} parent=5 // pred_region
      %s958 = ssub.s32 %s15, 2
      // Predicated region
      $region65: #{autoencoder_forward.1} parent=63 // pred_check
        %p959 = pneg %p238
      $region66: #{autoencoder_forward.1} parent=63 // pred_check_branch
        %961 = sbr.rel (%p959) target = $region68
      $region67: #{autoencoder_forward.1} parent=63 // pred_region
        %s962 = smul.u32 8, %s21
        %p963 = scmp.lt.s32.totalorder %s962, 15
        %s964 = scalar_select %p963, %s962, 15
        %s965 = smul.addr %s964, 8
        %s966 = scalar_lea.vmem %s9, %s965
      $region68: #{autoencoder_forward.1} parent=63 // pred_fallthru
        _
    $region64: #{autoencoder_forward.1} parent=5 // pred_fallthru
      _
  $region6: #{autoencoder_forward.1} parent=0 // loop_footer
    %s19 = sadd.s32 1, %s15
  $region7: #{autoencoder_forward.1} parent=0 // loop_footer_branch
    %14 = sbr.rel target = $region3
  $region8: #{autoencoder_forward.1} parent=0 // loop_exit
    _

</llo_original>
